<compile_context>
chip_gen: v7x
topology: tpu7x:2x2x1
jax: 0.10.0
libtpu: 0.0.40
codegen_flags: <defaults>
</compile_context>

<pallas_src>
import functools

import jax
import jax.numpy as jnp
import numpy as np
from jax.experimental import pallas as pl
from jax.experimental.pallas import tpu as pltpu

_LANE = 128
_SUBLANE = 8
_CBLK_MAX = 512      # output-column block (lanes) for the stride==1 kernel
_WTILE = 512         # width tile for the small-R "fold width into rows" layout
_NAN = float("nan")


def _round_up(x, m):
    return ((x + m - 1) // m) * m


def _vmem_config():
    """Returns (row-block VMEM budget, vmem_limit_bytes, row-block cap).

    Conservative defaults are safe for v7x (64 MiB physical VMEM); on 128 MiB
    parts (v5e/v6e) larger blocks amortize the ~0.35us/step grid overhead.
    """
    budget, limit, cap = 24 << 20, 48 << 20, 512
    try:
        info = pltpu.get_tpu_info()
        vmem = getattr(info, "vmem_capacity_bytes", None)
        if vmem is not None and vmem >= (120 << 20):
            budget, limit, cap = 48 << 20, 96 << 20, 1024
    except Exception:
        pass
    return budget, limit, cap


def _pick_row_block(n_rows, bytes_per_row, budget, cap, n_col_steps):
    rmax = max(_SUBLANE, (budget // max(bytes_per_row, 1)) // _SUBLANE * _SUBLANE)
    rblk = int(min(cap, rmax, _round_up(n_rows, _SUBLANE)))
    rblk = max(_SUBLANE, (rblk // _SUBLANE) * _SUBLANE)
    rpad = _round_up(n_rows, rblk)
    # Prefer >= 2 (even) total grid steps so a 2-TensorCore part (v7x) gets
    # balanced work; the extra step is ~0.35us of overhead on 1-TC parts.
    if (rpad // rblk) * max(n_col_steps, 1) < 2 and rblk > _SUBLANE:
        rblk = max(_SUBLANE, _round_up(rblk // 2, _SUBLANE))
        rpad = _round_up(n_rows, rblk)
    return rblk, rpad


def _finish(res):
    # torch: any +/-inf median (empty window, or a genuinely infinite median)
    # becomes NaN.
    return jnp.where(jnp.isinf(res), jnp.float32(jnp.nan), res)


def _masked_median(vals, nan_f):
    """Masked median of K windows.

    vals : K sanitized (rows, lanes) f32 windows, invalid elements = +inf.
    nan_f: K float {0,1} arrays marking invalid elements (None for K <= 2).
    Result: m-th smallest valid value, m = clamp(trunc((valid_count-1)/2), 0);
    windows with no valid element (or an infinite median) give NaN.
    """
    K = len(vals)
    if K == 1:
        return _finish(vals[0])
    if K == 2:
        # median index is 0 for every valid count (0, 1, 2) -> smaller value.
        return _finish(jnp.minimum(vals[0], vals[1]))
    if K == 3:
        lo = jnp.minimum(vals[0], vals[1])
        hi = jnp.maximum(vals[0], vals[1])
        mn = jnp.minimum(lo, vals[2])                     # sorted[0]
        md = jnp.maximum(lo, jnp.minimum(hi, vals[2]))    # sorted[1]
        n_invalid = nan_f[0] + nan_f[1] + nan_f[2]
        # valid_count == 3 -> median index 1, else index 0.
        return _finish(jnp.where(n_invalid > 0.5, mn, md))
    # General K: odd-even transposition sorting network + threshold selection
    # (median index r is taken iff valid_count >= 2r + 1).
    vcf = jnp.float32(K) - functools.reduce(lambda a, b: a + b, nan_f)
    vs = list(vals)
    for rnd in range(K):
        for i in range(rnd % 2, K - 1, 2):
            lo = jnp.minimum(vs[i], vs[i + 1])
            hi = jnp.maximum(vs[i], vs[i + 1])
            vs[i], vs[i + 1] = lo, hi
    res = vs[0]
    for r in range(1, (K - 1) // 2 + 1):
        res = jnp.where(vcf >= jnp.float32(2 * r + 1), vs[r], res)
    return _finish(res)


def _mmp_shift_kernel(x_ref, o_ref, *, kernel_size):
    """stride == 1 kernel.

    x_ref : (Rblk, Win) NaN-encoded rows with Win >= n_col_blocks*CBLK + K - 1.
    o_ref : (Rblk, CBLK) output block of column block pl.program_id(1);
            window element k of output lane l lives at input lane c0 + l + k.
    """
    K = kernel_size
    cblk = o_ref.shape[-1]
    c0 = pl.multiple_of(pl.program_id(1) * cblk, _LANE)
    base = x_ref[:, pl.ds(c0, cblk + K - 1)]
    # Hoisted sanitize: one isnan / where pass covers all K overlapping
    # windows; the per-k shifts below are static lane slices (XLU slot).
    isn = jnp.isnan(base)
    v_b = jnp.where(isn, jnp.float32(jnp.inf), base)
    vals = [v_b[:, k:k + cblk] for k in range(K)]
    if K <= 2:
        o_ref[...] = _masked_median(vals, None)
    else:
        n_b = jnp.where(isn, jnp.float32(1.0), jnp.float32(0.0))
        nanf = [n_b[:, k:k + cblk] for k in range(K)]
        o_ref[...] = _masked_median(vals, nanf)


def _mmp_windowed_kernel(xw_ref, o_ref, *, kernel_size):
    """stride != 1 fallback. xw_ref: (K, Rblk, Lblk) pre-windowed NaN-encoded."""
    K = kernel_size
    vals, nanf = [], []
    for k in range(K):
        xk = xw_ref[k]
        isn = jnp.isnan(xk)
        vals.append(jnp.where(isn, jnp.float32(jnp.inf), xk))
        if K > 2:
            nanf.append(jnp.where(isn, jnp.float32(1.0), jnp.float32(0.0)))
    o_ref[...] = _masked_median(vals, nanf if K > 2 else None)


@functools.partial(jax.jit, static_argnames=("kernel_size", "stride", "padding"))
def masked_median_pool1d(x, mask=None, *, kernel_size, stride=None, padding=0):
    K = int(kernel_size)
    stride = int(stride) if stride else K
    padding = int(padding)

    ndim = x.ndim
    if ndim == 2:
        x = x[:, None, :]
    assert x.ndim == 3, "Input must be (B, W) or (B, C, W)"
    x = x.astype(jnp.float32)

    # NaN-encode invalid positions.  The torch module zero-pads the *mask*, so
    # constant-NaN padding of the values is exactly equivalent to its
    # reflect-pad(values) + zero-pad(mask) combination.
    if mask is not None:
        mask = jnp.asarray(mask).astype(jnp.bool_)
        assert x.shape == mask.shape, "Input tensor and mask must have the same shape"
        # TODO(synk): a user mask marking a NaN-valued position as *valid* cannot
        # be represented by the NaN encoding; such positions are treated invalid.
        x = jnp.where(mask, x, jnp.float32(jnp.nan))
    # mask is None -> mask == ~isnan(x) and the NaN encoding is the identity
    # (no extra HBM pass).

    B, C, W = x.shape
    R = B * C
    Wp = W + 2 * padding
    L = (Wp - K) // stride + 1
    assert L >= 1, "kernel_size too large for padded input"

    x2 = x.reshape(R, W)
    budget, vmem_limit, row_cap = _vmem_config()

    if stride == 1:
        cblk = min(_CBLK_MAX, _round_up(L, _LANE))
        cpad = _round_up(L, cblk)
        win = cpad + K - 1
        bytes_nonfold = 2 * 4 * (win + cblk)       # double-buffered f32 in+out
        rmax_nonfold = budget // bytes_nonfold
        # Small-R (crepe (B,1,T)) or huge-W inputs: fold the width axis into
        # rows (with a K-1 halo) so all 8 sublanes do useful work and the grid
        # has enough steps for both TensorCores.
        use_fold = L >= 2 * _WTILE and (R < 64 or rmax_nonfold < 64)

        cparams = pltpu.CompilerParams(
            dimension_semantics=("parallel", "arbitrary"),
            vmem_limit_bytes=vmem_limit)
        kern = functools.partial(_mmp_shift_kernel, kernel_size=K)

        if not use_fold:
            rblk, rpad = _pick_row_block(R, bytes_nonfold, budget, row_cap,
                                         cpad // cblk)
            # Single fused pad: row padding + temporal padding + lane padding.
            xk = jnp.pad(x2, ((0, rpad - R), (padding, win - W - padding)),
                         constant_values=_NAN)
            out = pl.pallas_call(
                kern,
                out_shape=jax.ShapeDtypeStruct((rpad, cpad), jnp.float32),
                grid=(rpad // rblk, cpad // cblk),
                in_specs=[pl.BlockSpec((rblk, win), lambda r, c: (r, 0))],
                out_specs=pl.BlockSpec((rblk, cblk), lambda r, c: (r, c)),
                compiler_params=cparams,
            )(xk)
            out = out[:R, :L]
        else:
            n_w = -(-L // _WTILE)
            wwide = (n_w + 1) * _WTILE
            xw = jnp.pad(x2, ((0, 0), (padding, wwide - W - padding)),
                         constant_values=_NAN)
            main = xw[:, :n_w * _WTILE].reshape(R, n_w, _WTILE)
            halo = xw[:, _WTILE:].reshape(R, n_w, _WTILE)[:, :, :K - 1]
            folded = jnp.concatenate([main, halo], axis=-1)
            win_f = _WTILE + K - 1
            rows_f = R * n_w
            folded = folded.reshape(rows_f, win_f)
            bytes_fold = 2 * 4 * (win_f + _WTILE)
            rblk, rpad = _pick_row_block(rows_f, bytes_fold, budget, row_cap, 1)
            folded = jnp.pad(folded, ((0, rpad - rows_f), (0, 0)),
                             constant_values=_NAN)
            out = pl.pallas_call(
                kern,
                out_shape=jax.ShapeDtypeStruct((rpad, _WTILE), jnp.float32),
                grid=(rpad // rblk, 1),
                in_specs=[pl.BlockSpec((rblk, win_f), lambda r, c: (r, 0))],
                out_specs=pl.BlockSpec((rblk, _WTILE), lambda r, c: (r, c)),
                compiler_params=cparams,
            )(folded)
            out = out[:rows_f].reshape(R, n_w * _WTILE)[:, :L]
    else:
        # General-stride fallback: host-side unfold to (K, R, L).
        # TODO(synk): replace with in-kernel strided pl.ds reads to keep HBM
        # traffic at 1x for stride != 1 (not the crepe use case).
        lpad = _round_up(L, _LANE)
        x2p = jnp.pad(x2, ((0, 0), (padding, padding)), constant_values=_NAN)
        xw = jnp.stack(
            [x2p[:, k:k + stride * (L - 1) + 1:stride] for k in range(K)],
            axis=0)
        bytes_row = 2 * 4 * (K + 1) * lpad
        rblk, rpad = _pick_row_block(R, bytes_row, budget, row_cap, 1)
        xw = jnp.pad(xw, ((0, 0), (0, rpad - R), (0, lpad - L)),
                     constant_values=_NAN)
        out = pl.pallas_call(
            functools.partial(_mmp_windowed_kernel, kernel_size=K),
            out_shape=jax.ShapeDtypeStruct((rpad, lpad), jnp.float32),
            grid=(rpad // rblk,),
            in_specs=[pl.BlockSpec((K, rblk, lpad), lambda r: (0, r, 0))],
            out_specs=pl.BlockSpec((rblk, lpad), lambda r: (r, 0)),
            compiler_params=pltpu.CompilerParams(
                dimension_semantics=("parallel",),
                vmem_limit_bytes=vmem_limit),
        )(xw)
        out = out[:R, :L]

    out = out.reshape(B, C, L)
    if ndim == 2:
        out = out[:, 0, :]
    return out


def _ref_masked_median_pool1d(x, kernel_size, stride, padding):
    """Pure numpy reference mirroring the PyTorch implementation exactly."""
    x = np.asarray(x, np.float32)  # (B, C, W)
    mask = ~np.isnan(x)
    mx = np.where(mask, x, 0.0)
    if padding > 0:
        xp = np.pad(mx, ((0, 0), (0, 0), (padding, padding)), mode="reflect")
    else:
        xp = mx
    mp = np.pad(mask.astype(np.float32), ((0, 0), (0, 0), (padding, padding)))
    Wp = xp.shape[-1]
    L = (Wp - kernel_size) // stride + 1
    out = np.zeros(x.shape[:2] + (L,), np.float32)
    for l in range(L):
        xwin = xp[..., l * stride:l * stride + kernel_size]
        mwin = mp[..., l * stride:l * stride + kernel_size]
        xm = np.where(mwin > 0, xwin, np.inf)
        xs = np.sort(xm, axis=-1)
        vc = mwin.sum(-1)
        mi = np.maximum(np.trunc((vc - 1) / 2).astype(np.int64), 0)
        sel = np.take_along_axis(xs, mi[..., None], axis=-1)[..., 0]
        out[..., l] = np.where(np.isinf(sel), np.nan, sel)
    return out


if __name__ == "__main__":
    # 1) crepe.py configuration: MaskedMedianPool1d(3, 1, 1), small (B, C, W).
    x = jax.random.normal(jax.random.PRNGKey(0), (2, 4, 16), dtype=jnp.float32)
    x = x.at[0, 1, 3].set(jnp.nan)
    x = x.at[1, 2, 0].set(jnp.nan)
    x = x.at[1, 2, 1].set(jnp.nan)
    out = jax.block_until_ready(
        masked_median_pool1d(x, kernel_size=3, stride=1, padding=1))
    ref = _ref_masked_median_pool1d(np.asarray(x), 3, 1, 1)
    np.testing.assert_allclose(np.asarray(out), ref, rtol=1e-6, atol=1e-6,
                               equal_nan=True)

    # 2) small-R / long-W crepe-like input -> width-folded (halo) layout path.
    xf = jax.random.normal(jax.random.PRNGKey(1), (2, 1, 2048), dtype=jnp.float32)
    xf = xf.at[0, 0, 100].set(jnp.nan)
    xf = xf.at[1, 0, 511].set(jnp.nan)
    xf = xf.at[1, 0, 512].set(jnp.nan)
    outf = jax.block_until_ready(
        masked_median_pool1d(xf, kernel_size=3, stride=1, padding=1))
    reff = _ref_masked_median_pool1d(np.asarray(xf), 3, 1, 1)
    np.testing.assert_allclose(np.asarray(outf), reff, rtol=1e-6, atol=1e-6,
                               equal_nan=True)

    # 3) larger R with two output-column blocks (2-D grid, dynamic c0 != 0).
    xl = jax.random.normal(jax.random.PRNGKey(2), (16, 16, 700), dtype=jnp.float32)
    xl = xl.at[3, 5, 600].set(jnp.nan)
    outl = jax.block_until_ready(
        masked_median_pool1d(xl, kernel_size=3, stride=1, padding=1))
    refl = _ref_masked_median_pool1d(np.asarray(xl), 3, 1, 1)
    np.testing.assert_allclose(np.asarray(outl), refl, rtol=1e-6, atol=1e-6,
                               equal_nan=True)

    # 4) stride != 1 fallback, 2-D input, general-K (sorting network) path.
    x2 = jax.random.normal(jax.random.PRNGKey(3), (2, 16), dtype=jnp.float32)
    x2 = x2.at[0, 5].set(jnp.nan)
    out2 = jax.block_until_ready(
        masked_median_pool1d(x2, kernel_size=4, stride=2, padding=1))
    ref2 = _ref_masked_median_pool1d(np.asarray(x2)[:, None, :], 4, 2, 1)[:, 0, :]
    np.testing.assert_allclose(np.asarray(out2), ref2, rtol=1e-6, atol=1e-6,
                               equal_nan=True)

    print("KERNEL_OK")
</pallas_src>

<mosaic_0001>
module attributes {stable_mosaic.version = 11 : i64} {
  func.func @_mmp_shift_kernel(%arg0: i32, %arg1: i32, %arg2: memref<8x130xf32, #tpu.memory_space<vmem>>, %arg3: memref<8x128xf32, #tpu.memory_space<vmem>>) attributes {dimension_semantics = [#tpu.dimension_semantics<parallel>, #tpu.dimension_semantics<arbitrary>], iteration_bounds = array<i64: 1, 1>, scalar_prefetch = 0 : i64, scratch_operands = 0 : i64, tpu.core_type = #tpu.core_type<tc>, window_params = [{transform_indices = @transform_0, window_bounds = array<i64: 8, 130>}, {transform_indices = @transform_1, window_bounds = array<i64: 8, 128>}]} {
    %c128_i32 = arith.constant 128 : i32
    %0 = arith.muli %arg1, %c128_i32 : i32
    %1 = tpu.assume_multiple %0, 128 : i32
    %c0 = arith.constant 0 : index
    %2 = arith.index_cast %1 : i32 to index
    %3 = vector.load %arg2[%c0, %2] : memref<8x130xf32, #tpu.memory_space<vmem>>, vector<8x130xf32>
    %4 = arith.cmpf one, %3, %3 : vector<8x130xf32>
    %cst = arith.constant 0x7F800000 : f32
    %5 = vector.broadcast %cst : f32 to vector<8x130xf32>
    %6 = arith.select %4, %5, %3 : vector<8x130xi1>, vector<8x130xf32>
    %7 = vector.extract_strided_slice %6 {offsets = [0, 0], sizes = [8, 128], strides = [1, 1]} : vector<8x130xf32> to vector<8x128xf32>
    %8 = vector.extract_strided_slice %6 {offsets = [0, 1], sizes = [8, 128], strides = [1, 1]} : vector<8x130xf32> to vector<8x128xf32>
    %9 = vector.extract_strided_slice %6 {offsets = [0, 2], sizes = [8, 128], strides = [1, 1]} : vector<8x130xf32> to vector<8x128xf32>
    %cst_0 = arith.constant 1.000000e+00 : f32
    %cst_1 = arith.constant 0.000000e+00 : f32
    %10 = vector.broadcast %cst_0 : f32 to vector<8x130xf32>
    %11 = vector.broadcast %cst_1 : f32 to vector<8x130xf32>
    %12 = arith.select %4, %10, %11 : vector<8x130xi1>, vector<8x130xf32>
    %13 = vector.extract_strided_slice %12 {offsets = [0, 0], sizes = [8, 128], strides = [1, 1]} : vector<8x130xf32> to vector<8x128xf32>
    %14 = vector.extract_strided_slice %12 {offsets = [0, 1], sizes = [8, 128], strides = [1, 1]} : vector<8x130xf32> to vector<8x128xf32>
    %15 = vector.extract_strided_slice %12 {offsets = [0, 2], sizes = [8, 128], strides = [1, 1]} : vector<8x130xf32> to vector<8x128xf32>
    %16 = arith.minimumf %7, %8 : vector<8x128xf32>
    %17 = arith.maximumf %7, %8 : vector<8x128xf32>
    %18 = arith.minimumf %16, %9 : vector<8x128xf32>
    %19 = arith.minimumf %17, %9 : vector<8x128xf32>
    %20 = arith.maximumf %16, %19 : vector<8x128xf32>
    %21 = arith.addf %13, %14 : vector<8x128xf32>
    %22 = arith.addf %21, %15 : vector<8x128xf32>
    %cst_2 = arith.constant 5.000000e-01 : f32
    %23 = vector.broadcast %cst_2 : f32 to vector<8x128xf32>
    %24 = arith.cmpf ogt, %22, %23 : vector<8x128xf32>
    %25 = arith.select %24, %18, %20 : vector<8x128xi1>, vector<8x128xf32>
    %26 = math.absf %25 : vector<8x128xf32>
    %cst_3 = arith.constant 0x7F800000 : f32
    %27 = vector.broadcast %cst_3 : f32 to vector<8x128xf32>
    %28 = arith.cmpf oeq, %26, %27 : vector<8x128xf32>
    %cst_4 = arith.constant 0x7FC00000 : f32
    %29 = vector.broadcast %cst_4 : f32 to vector<8x128xf32>
    %30 = arith.select %28, %29, %25 : vector<8x128xi1>, vector<8x128xf32>
    %c0_5 = arith.constant 0 : index
    %c0_6 = arith.constant 0 : index
    %31 = vector.load %arg3[%c0_5, %c0_6] : memref<8x128xf32, #tpu.memory_space<vmem>>, vector<8x128xf32>
    tpu.vector_store %arg3[%c0_5, %c0_6], %30 {strides = array<i32>} : memref<8x128xf32, #tpu.memory_space<vmem>>, vector<8x128xf32>,
    return
  }
  func.func @transform_0(%arg0: i32, %arg1: i32) -> (i32, i32) {
    %c0_i32 = arith.constant 0 : i32
    %c0_i32_0 = arith.constant 0 : i32
    return %arg0, %c0_i32 : i32, i32
  }
  func.func @transform_1(%arg0: i32, %arg1: i32) -> (i32, i32) {
    %c0_i32 = arith.constant 0 : i32
    return %arg0, %arg1 : i32, i32
  }
}

</mosaic_0001>

<llo_original>
// kernel: masked_median_pool1d.1
$region0: #{masked_median_pool1d.1}
  #allocation0 [shape = 'u32[]', space=smem, size = 0x4, offset = 0x4, fixed_abs, tag = 'smem constant byte address 0x4 - core index']
  #allocation1 [shape = 'u32[144,128]{1,0:T(1,128)}', space=vmem, size = 0x12000, scoped, tag = 'internal scratch']
  %s0 = inlined_call_operand.vmem [shape: f32[8,130], index: 0, kind: input, shape index: {}]
  %s1 = inlined_call_operand.hbm [shape: f32[8,128], index: 1, kind: output, shape index: {}]
  %s2 = sld [smem:[#allocation0]]
  $region14: #{masked_median_pool1d.1} parent=0
    _
  %s4 = ssub.s32 1, %s2
  %s5 = scalar_select 0, %s4, %s2
  $region1: #{masked_median_pool1d.1} parent=0
    #allocation2 [shape = 'u8[4096]{0}', space=vmem, size = 0x1000, scoped, tag = 'output window, operand 0, single buffered']
    #allocation3 [shape = 's32[1]{0}', space=sflag, size = 0x4, scoped, tag = 'scoped memory for masked_median_pool1d.1']
    %6 = vsyncpa [#allocation3], 0
    // Predicated region
    $region2: #{masked_median_pool1d.1} parent=1 // pred_check
      _
    $region3: #{masked_median_pool1d.1} parent=1 // pred_check_branch
      %8 = sbr.rel (0) target = $region5
    $region4: #{masked_median_pool1d.1} parent=1 // pred_region
      _
    $region5: #{masked_median_pool1d.1} parent=1 // pred_fallthru
      _
    %s9 = smul.u32 0, 128
    %s10 = sshra.s32 %s9, 7
    %s11 = sand.u32 %s9, 127
    %s12 = smul.addr %s10, 8
    %s13 = scalar_lea.vmem %s0, %s12
    %v14 = vld [vmem:[%s13] sm:$0xff]
    %v15 = vld [vmem:[%s13 + $0x8] sm:$0xff]
    %vm16 = vcmp.ne.f32.partialorder %v14, %v14
    %vm17 = vcmp.ne.f32.partialorder %v15, %v15
    %v18 = vsel %vm16, inf, %v14
    %v19 = vsel %vm17, inf, %v15
    %v20 = vsel %vm16, 1.0, 0.0
    %v21 = vsel %vm17, 1.0, 0.0
    %24 = vrot.lane.b32.xlu0 %v18, 127
    %v25 = vpop.permute.xlu0 %24
    %26 = vrot.lane.b32.xlu0 %v19, 127
    %v27 = vpop.permute.xlu0 %26
    %vm28 = vcmask 1039360
    %v29 = vsel %vm28, %v25, %v27
    %v31 = vmin.f32 %v18, %v29
    %v32 = vmax.f32 %v18, %v29
    %33 = vrot.lane.b32.xlu0 %v18, 126
    %v34 = vpop.permute.xlu0 %33
    %35 = vrot.lane.b32.xlu0 %v19, 126
    %v36 = vpop.permute.xlu0 %35
    %vm37 = vcmask 1031168
    %v38 = vsel %vm37, %v34, %v36
    %v40 = vmin.f32 %v31, %v38
    %v41 = vmin.f32 %v32, %v38
    %v42 = vmax.f32 %v31, %v41
    %45 = vrot.lane.b32.xlu0 %v20, 127
    %v46 = vpop.permute.xlu0 %45
    %47 = vrot.lane.b32.xlu0 %v21, 127
    %v48 = vpop.permute.xlu0 %47
    %v49 = vsel %vm28, %v46, %v48
    %v51 = vadd.f32 %v20, %v49
    %52 = vrot.lane.b32.xlu0 %v20, 126
    %v53 = vpop.permute.xlu0 %52
    %54 = vrot.lane.b32.xlu0 %v21, 126
    %v55 = vpop.permute.xlu0 %54
    %v56 = vsel %vm37, %v53, %v55
    %v58 = vadd.f32 %v51, %v56
    %vm59 = vcmp.gt.f32.partialorder %v58, 0.5
    %v60 = vsel %vm59, %v40, %v42
    %v61 = vand.u32 2147483647, %v60
    %vm62 = vcmp.eq.f32.partialorder %v61, inf
    %v63 = vsel %vm62, nan, %v60
    %64 = vst [vmem:[#allocation2] sm:$0xff] %v63
    // Predicated region
    $region6: #{masked_median_pool1d.1} parent=1 // pred_check
      _
    $region7: #{masked_median_pool1d.1} parent=1 // pred_check_branch
      %66 = sbr.rel (0) target = $region9
    $region8: #{masked_median_pool1d.1} parent=1 // pred_region
      %s68 = ssub.s32 128, 128
      %69 = vsyncadd [#allocation3], %s68
      %s71 = sshll.u32 [#allocation2], 4
      %s72 = int_to_ptr.vmem [resolvable:$true] %s71
      %74 = dma.vmem_to_hbm [thread:$0]  %s72, 128, %s1, [#allocation3]
    $region9: #{masked_median_pool1d.1} parent=1 // pred_fallthru
      _
    // Predicated region
    $region10: #{masked_median_pool1d.1} parent=1 // pred_check
      _
    $region11: #{masked_median_pool1d.1} parent=1 // pred_check_branch
      %76 = sbr.rel (0) target = $region13
    $region12: #{masked_median_pool1d.1} parent=1 // pred_region
      %77 = dma.done [#allocation3], 128
    $region13: #{masked_median_pool1d.1} parent=1 // pred_fallthru
      _
    %78 = vsyncpa [#allocation3], 1

</llo_original>
